<compile_context>
chip_gen: v7x
topology: tpu7x:2x2x1
jax: 0.10.0
libtpu: 0.0.40
codegen_flags: <defaults>
</compile_context>

<pallas_src>
import functools

import jax
import jax.numpy as jnp
from jax import lax
from jax.experimental import pallas as pl
from jax.experimental.pallas import tpu as pltpu


def speech_kernel(xcat_ref, w1_ref, w2_ref, wf1_ref, small_ref, out_ref, *, B, T):
    """Whole forward pass in one invocation.

    xcat_ref  : (B*T, 3*Cin)  conv1 im2col built in the wrapper (tap0|tap1|tap2 lanes),
                              compute dtype
    w1_ref    : (3*Cin, C1)   conv1 taps concatenated along K, compute dtype
    w2_ref    : (3*C1, C2)    conv2 taps concatenated along K, compute dtype
    wf1_ref   : (C2, H)       fc1 weight (transposed), f32, already scaled by 1/T
    small_ref : (8, 128)      f32 packed tiny operands:
                              row0=b1[:C1] row1=b2[:C2] row2=bf1[:H] row3=wf2[:H] row4[0]=bf2
    out_ref   : (B, 1)        f32
    """
    M = B * T
    C1 = w1_ref.shape[1]
    C2 = w2_ref.shape[1]
    H = wf1_ref.shape[1]

    small = small_ref[...]                                # one DMA, static slices below
    b1 = small[0:1, 0:C1]
    b2 = small[1:2, 0:C2]
    bf1 = small[2:3, 0:H]
    wf2 = small[3:4, 0:H]
    bf2 = small[4:5, 0:1]

    # ---- conv1 (k=3, pad=1): im2col was prebuilt -> single (M,3Cin)@(3Cin,C1) matmul
    h = jnp.dot(xcat_ref[...], w1_ref[...], preferred_element_type=jnp.float32)
    h = jnp.maximum(h + b1, 0.0)                          # (M, C1) f32

    # ---- conv2 (k=3, pad=1): per-tap matmuls; time shifts via XLU sublane rolls,
    #      per-batch boundary rows zeroed with an iota mask (no scratch, no concat).
    t_idx = lax.broadcasted_iota(jnp.int32, (M, C1), 0) % T
    h_prev = jnp.where(t_idx == 0, 0.0, pltpu.roll(h, shift=1, axis=0))       # h[t-1]
    h_next = jnp.where(t_idx == T - 1, 0.0, pltpu.roll(h, shift=M - 1, axis=0))  # h[t+1]

    cd = w2_ref.dtype
    g = jnp.dot(h_prev.astype(cd), w2_ref[0:C1, :],
                preferred_element_type=jnp.float32)
    g = g + jnp.dot(h.astype(cd), w2_ref[C1:2 * C1, :],
                    preferred_element_type=jnp.float32)
    g = g + jnp.dot(h_next.astype(cd), w2_ref[2 * C1:3 * C1, :],
                    preferred_element_type=jnp.float32)
    g = jnp.maximum(g + b2, 0.0)                          # (M, C2) f32

    # ---- AdaptiveAvgPool1d(1): time SUM here; 1/T is folded into wf1 in the wrapper
    pooled = jnp.sum(g.reshape(B, T, C2), axis=1)         # (B, C2) f32

    # ---- fc1 + ReLU (kept in f32 on every compute path)
    f1 = jnp.dot(pooled, wf1_ref[...], preferred_element_type=jnp.float32)
    f1 = jnp.maximum(f1 + bf1, 0.0)                       # (B, H) f32

    # ---- fc2 (N=1): VPU multiply + lane reduction, no MXU pass
    out = jnp.sum(f1 * wf2, axis=-1, keepdims=True) + bf2
    out_ref[...] = out.astype(out_ref.dtype)              # (B, 1)


def speech_model_pallas(x_ncl, params, *, compute_dtype=jnp.bfloat16):
    """x_ncl: (B, Cin, T) like PyTorch Conv1d input. Returns (B, 1) float32."""
    (w1_cat, w2_cat, wf1_t, small) = params
    B, Cin, T = x_ncl.shape
    C1 = w1_cat.shape[1]
    C2 = w2_cat.shape[1]
    H = wf1_t.shape[1]
    M = B * T

    # conv1 im2col in the wrapper (XLA): channels-last, pad=1, tap-major lane concat
    x_btc = jnp.transpose(x_ncl, (0, 2, 1))                        # (B, T, Cin)
    xpad = jnp.pad(x_btc, ((0, 0), (1, 1), (0, 0)))                # (B, T+2, Cin)
    x_cat = jnp.concatenate([xpad[:, k:k + T, :] for k in range(3)], axis=-1)
    x_cat = x_cat.reshape(M, 3 * Cin).astype(compute_dtype)        # (M, 3*Cin)

    # matmul operands for the convs in the compute dtype; fc1 stays f32 (folded 1/T)
    w1c = w1_cat.astype(compute_dtype)
    w2c = w2_cat.astype(compute_dtype)
    wf1c = (wf1_t / jnp.float32(T)).astype(jnp.float32)

    args = (x_cat, w1c, w2c, wf1c, small)
    in_specs = [pl.BlockSpec(a.shape, functools.partial(lambda nd, i: (0,) * nd, a.ndim))
                for a in args]

    flops = (2 * M * 3 * Cin * C1 + 2 * M * 3 * C1 * C2
             + 2 * B * C2 * H + 2 * B * H)
    bytes_accessed = int(sum(a.size * a.dtype.itemsize for a in args) + B * 4)

    out = pl.pallas_call(
        functools.partial(speech_kernel, B=B, T=T),
        out_shape=jax.ShapeDtypeStruct((B, 1), jnp.float32),
        grid=(1,),
        in_specs=in_specs,
        out_specs=pl.BlockSpec((B, 1), lambda i: (0, 0)),
        compiler_params=pltpu.CompilerParams(
            dimension_semantics=("arbitrary",)),
        cost_estimate=pl.CostEstimate(flops=flops, transcendentals=0,
                                      bytes_accessed=bytes_accessed),
    )(*args)
    return out


def speech_model_reference(x_ncl, torch_style_params):
    """Pure-JAX reference using lax.conv, matching PyTorch semantics exactly."""
    (w1_oik, b1, w2_oik, b2, wfc1_oi, bfc1, wfc2_oi, bfc2) = torch_style_params
    y = lax.conv_general_dilated(x_ncl, w1_oik, window_strides=(1,),
                                 padding=((1, 1),),
                                 dimension_numbers=('NCH', 'OIH', 'NCH'))
    y = jax.nn.relu(y + b1[None, :, None])
    y = lax.conv_general_dilated(y, w2_oik, window_strides=(1,),
                                 padding=((1, 1),),
                                 dimension_numbers=('NCH', 'OIH', 'NCH'))
    y = jax.nn.relu(y + b2[None, :, None])
    p = jnp.mean(y, axis=2)                               # (B, 128)
    f = jax.nn.relu(p @ wfc1_oi.T + bfc1)                 # (B, 64)
    return f @ wfc2_oi.T + bfc2                           # (B, 1)


def init_params(key, input_dim=128):
    """Deterministic synthetic parameters in PyTorch layouts, plus kernel-friendly views."""
    ks = jax.random.split(key, 8)
    scale = 0.05
    w1_oik = scale * jax.random.normal(ks[0], (64, input_dim, 3), jnp.float32)   # Conv1d(128,64,3)
    b1 = scale * jax.random.normal(ks[1], (64,), jnp.float32)
    w2_oik = scale * jax.random.normal(ks[2], (128, 64, 3), jnp.float32)          # Conv1d(64,128,3)
    b2 = scale * jax.random.normal(ks[3], (128,), jnp.float32)
    wfc1_oi = scale * jax.random.normal(ks[4], (64, 128), jnp.float32)            # Linear(128,64)
    bfc1 = scale * jax.random.normal(ks[5], (64,), jnp.float32)
    wfc2_oi = scale * jax.random.normal(ks[6], (1, 64), jnp.float32)              # Linear(64,1)
    bfc2 = scale * jax.random.normal(ks[7], (1,), jnp.float32)

    torch_style = (w1_oik, b1, w2_oik, b2, wfc1_oi, bfc1, wfc2_oi, bfc2)

    # Kernel-friendly layouts:
    #  * conv weights as (3*Cin, Cout): tap-major concatenation matching the wrapper's
    #    lane-axis im2col order (tap 0 | tap 1 | tap 2) and the kernel's per-tap slices,
    #  * fc1 weight transposed (1/T is folded in later, where T is known),
    #  * all tiny operands packed into ONE (8,128) f32 array (one DMA instead of five).
    w1_cat = jnp.transpose(w1_oik, (2, 1, 0)).reshape(3 * input_dim, 64)   # (384, 64)
    w2_cat = jnp.transpose(w2_oik, (2, 1, 0)).reshape(3 * 64, 128)         # (192, 128)
    wf1_t = wfc1_oi.T                                                      # (128, 64)

    small = jnp.zeros((8, 128), jnp.float32)
    small = small.at[0, :64].set(b1)          # conv1 bias
    small = small.at[1, :128].set(b2)         # conv2 bias
    small = small.at[2, :64].set(bfc1)        # fc1 bias
    small = small.at[3, :64].set(wfc2_oi[0])  # fc2 weight row
    small = small.at[4, 0].set(bfc2[0])       # fc2 bias

    kernel_params = (w1_cat, w2_cat, wf1_t, small)
    return torch_style, kernel_params


if __name__ == "__main__":
    key = jax.random.PRNGKey(0)
    kx, kp = jax.random.split(key)

    B, Cin, T = 2, 128, 16                 # input_dim=128 as in the module's default
    x = jax.random.normal(kx, (B, Cin, T), jnp.float32)

    torch_style, kernel_params = init_params(kp, input_dim=Cin)

    ref = jax.block_until_ready(speech_model_reference(x, torch_style))

    # f32 compute path: tight check against the PyTorch-semantics reference.
    out_f32 = jax.block_until_ready(
        speech_model_pallas(x, kernel_params, compute_dtype=jnp.float32))
    assert out_f32.shape == (B, 1)
    if not jnp.allclose(out_f32, ref, rtol=1e-4, atol=1e-5):
        raise AssertionError(f"f32 mismatch: pallas={out_f32} ref={ref}")

    # bf16 conv-matmul path (default; MXU-native on v5e/v6e/v7x); f32 accumulation,
    # f32 bias/ReLU/pool/fc1, so only a loose tolerance vs the f32 reference applies.
    out_bf16 = jax.block_until_ready(
        speech_model_pallas(x, kernel_params, compute_dtype=jnp.bfloat16))
    if not jnp.allclose(out_bf16, ref, rtol=1e-1, atol=2e-2):
        raise AssertionError(f"bf16 mismatch: pallas={out_bf16} ref={ref}")

    print("KERNEL_OK")
</pallas_src>

<mosaic_0001>
module attributes {stable_mosaic.version = 11 : i64} {
  func.func @speech_kernel(%arg0: i32, %arg1: memref<32x384xf32, #tpu.memory_space<vmem>>, %arg2: memref<384x64xf32, #tpu.memory_space<vmem>>, %arg3: memref<192x128xf32, #tpu.memory_space<vmem>>, %arg4: memref<128x64xf32, #tpu.memory_space<vmem>>, %arg5: memref<8x128xf32, #tpu.memory_space<vmem>>, %arg6: memref<2x1xf32, #tpu.memory_space<vmem>>) attributes {dimension_semantics = [#tpu.dimension_semantics<arbitrary>], iteration_bounds = array<i64: 1>, scalar_prefetch = 0 : i64, scratch_operands = 0 : i64, tpu.core_type = #tpu.core_type<tc>, window_params = [{pipeline_mode = #tpu.pipeline_mode<synchronous>, transform_indices = @transform_0, window_bounds = array<i64: 32, 384>}, {pipeline_mode = #tpu.pipeline_mode<synchronous>, transform_indices = @transform_1, window_bounds = array<i64: 384, 64>}, {pipeline_mode = #tpu.pipeline_mode<synchronous>, transform_indices = @transform_2, window_bounds = array<i64: 192, 128>}, {pipeline_mode = #tpu.pipeline_mode<synchronous>, transform_indices = @transform_3, window_bounds = array<i64: 128, 64>}, {pipeline_mode = #tpu.pipeline_mode<synchronous>, transform_indices = @transform_4, window_bounds = array<i64: 8, 128>}, {pipeline_mode = #tpu.pipeline_mode<synchronous>, transform_indices = @transform_5, window_bounds = array<i64: 2, 1>}]} {
    %c0 = arith.constant 0 : index
    %c0_0 = arith.constant 0 : index
    %0 = vector.load %arg5[%c0, %c0_0] : memref<8x128xf32, #tpu.memory_space<vmem>>, vector<8x128xf32>
    %1 = vector.extract_strided_slice %0 {offsets = [0, 0], sizes = [1, 64], strides = [1, 1]} : vector<8x128xf32> to vector<1x64xf32>
    %2 = vector.extract_strided_slice %0 {offsets = [1, 0], sizes = [1, 128], strides = [1, 1]} : vector<8x128xf32> to vector<1x128xf32>
    %3 = vector.extract_strided_slice %0 {offsets = [2, 0], sizes = [1, 64], strides = [1, 1]} : vector<8x128xf32> to vector<1x64xf32>
    %4 = vector.extract_strided_slice %0 {offsets = [3, 0], sizes = [1, 64], strides = [1, 1]} : vector<8x128xf32> to vector<1x64xf32>
    %5 = vector.extract_strided_slice %0 {offsets = [4, 0], sizes = [1, 1], strides = [1, 1]} : vector<8x128xf32> to vector<1x1xf32>
    %c0_1 = arith.constant 0 : index
    %c0_2 = arith.constant 0 : index
    %6 = vector.load %arg1[%c0_1, %c0_2] : memref<32x384xf32, #tpu.memory_space<vmem>>, vector<32x384xf32>
    %c0_3 = arith.constant 0 : index
    %c0_4 = arith.constant 0 : index
    %7 = vector.load %arg2[%c0_3, %c0_4] : memref<384x64xf32, #tpu.memory_space<vmem>>, vector<384x64xf32>
    %cst = arith.constant dense<0.000000e+00> : vector<32x64xf32>
    %8 = tpu.matmul %6, %7, %cst {dimension_numbers = #tpu.dot_dimension_numbers<[1], [0], [0], [1], [0, 0, 1, 1], [], []>} : vector<32x384xf32>, vector<384x64xf32>, vector<32x64xf32> -> vector<32x64xf32>
    %9 = vector.broadcast %1 : vector<1x64xf32> to vector<32x64xf32>
    %10 = arith.addf %8, %9 : vector<32x64xf32>
    %cst_5 = arith.constant 0.000000e+00 : f32
    %11 = vector.broadcast %cst_5 : f32 to vector<32x64xf32>
    %12 = arith.maximumf %10, %11 : vector<32x64xf32>
    %13 = tpu.iota {dimensions = array<i32: 0>} : vector<32x64xi32>
    %c16_i32 = arith.constant 16 : i32
    %c0_i32 = arith.constant 0 : i32
    %14 = arith.cmpi eq, %c16_i32, %c0_i32 : i32
    %c1_i32 = arith.constant 1 : i32
    %15 = arith.select %14, %c1_i32, %c16_i32 : i32
    %16 = vector.broadcast %15 : i32 to vector<32x64xi32>
    %17 = arith.remsi %13, %16 : vector<32x64xi32>
    %c0_i32_6 = arith.constant 0 : i32
    %18 = vector.broadcast %c0_i32_6 : i32 to vector<32x64xi32>
    %19 = arith.cmpi ne, %17, %18 : vector<32x64xi32>
    %c0_i32_7 = arith.constant 0 : i32
    %20 = vector.broadcast %c0_i32_7 : i32 to vector<32x64xi32>
    %21 = arith.cmpi slt, %17, %20 : vector<32x64xi32>
    %c0_i32_8 = arith.constant 0 : i32
    %22 = arith.cmpi slt, %15, %c0_i32_8 : i32
    %23 = vector.broadcast %22 : i1 to vector<32x64xi1>
    %24 = vector.broadcast %23 : vector<32x64xi1> to vector<32x64xi1>
    %25 = arith.xori %21, %24 : vector<32x64xi1>
    %26 = arith.andi %25, %19 : vector<32x64xi1>
    %27 = vector.broadcast %15 : i32 to vector<32x64xi32>
    %28 = arith.addi %17, %27 : vector<32x64xi32>
    %29 = arith.select %26, %28, %17 : vector<32x64xi1>, vector<32x64xi32>
    %c0_i32_9 = arith.constant 0 : i32
    %30 = vector.broadcast %c0_i32_9 : i32 to vector<32x64xi32>
    %31 = arith.cmpi eq, %29, %30 : vector<32x64xi32>
    %c1_i32_10 = arith.constant 1 : i32
    %32 = tpu.dynamic_rotate %12 by %c1_i32_10 dim 0 : vector<32x64xf32>, i32 -> vector<32x64xf32>
    %cst_11 = arith.constant 0.000000e+00 : f32
    %33 = vector.broadcast %cst_11 : f32 to vector<32x64xf32>
    %34 = arith.select %31, %33, %32 : vector<32x64xi1>, vector<32x64xf32>
    %c15_i32 = arith.constant 15 : i32
    %35 = vector.broadcast %c15_i32 : i32 to vector<32x64xi32>
    %36 = arith.cmpi eq, %29, %35 : vector<32x64xi32>
    %c31_i32 = arith.constant 31 : i32
    %37 = tpu.dynamic_rotate %12 by %c31_i32 dim 0 : vector<32x64xf32>, i32 -> vector<32x64xf32>
    %cst_12 = arith.constant 0.000000e+00 : f32
    %38 = vector.broadcast %cst_12 : f32 to vector<32x64xf32>
    %39 = arith.select %36, %38, %37 : vector<32x64xi1>, vector<32x64xf32>
    %c0_13 = arith.constant 0 : index
    %c0_14 = arith.constant 0 : index
    %40 = vector.load %arg3[%c0_13, %c0_14] : memref<192x128xf32, #tpu.memory_space<vmem>>, vector<64x128xf32>
    %cst_15 = arith.constant dense<0.000000e+00> : vector<32x128xf32>
    %41 = tpu.matmul %34, %40, %cst_15 {dimension_numbers = #tpu.dot_dimension_numbers<[1], [0], [0], [1], [0, 0, 1, 1], [], []>} : vector<32x64xf32>, vector<64x128xf32>, vector<32x128xf32> -> vector<32x128xf32>
    %c64 = arith.constant 64 : index
    %c0_16 = arith.constant 0 : index
    %42 = vector.load %arg3[%c64, %c0_16] : memref<192x128xf32, #tpu.memory_space<vmem>>, vector<64x128xf32>
    %cst_17 = arith.constant dense<0.000000e+00> : vector<32x128xf32>
    %43 = tpu.matmul %12, %42, %cst_17 {dimension_numbers = #tpu.dot_dimension_numbers<[1], [0], [0], [1], [0, 0, 1, 1], [], []>} : vector<32x64xf32>, vector<64x128xf32>, vector<32x128xf32> -> vector<32x128xf32>
    %44 = arith.addf %41, %43 : vector<32x128xf32>
    %c128 = arith.constant 128 : index
    %c0_18 = arith.constant 0 : index
    %45 = vector.load %arg3[%c128, %c0_18] : memref<192x128xf32, #tpu.memory_space<vmem>>, vector<64x128xf32>
    %cst_19 = arith.constant dense<0.000000e+00> : vector<32x128xf32>
    %46 = tpu.matmul %39, %45, %cst_19 {dimension_numbers = #tpu.dot_dimension_numbers<[1], [0], [0], [1], [0, 0, 1, 1], [], []>} : vector<32x64xf32>, vector<64x128xf32>, vector<32x128xf32> -> vector<32x128xf32>
    %47 = arith.addf %44, %46 : vector<32x128xf32>
    %48 = vector.broadcast %2 : vector<1x128xf32> to vector<32x128xf32>
    %49 = arith.addf %47, %48 : vector<32x128xf32>
    %cst_20 = arith.constant 0.000000e+00 : f32
    %50 = vector.broadcast %cst_20 : f32 to vector<32x128xf32>
    %51 = arith.maximumf %49, %50 : vector<32x128xf32>
    %52 = vector.shape_cast %51 : vector<32x128xf32> to vector<2x16x128xf32>
    %cst_21 = arith.constant dense<0.000000e+00> : vector<2x128xf32>
    %53 = vector.multi_reduction <add>, %52, %cst_21 [1] : vector<2x16x128xf32> to vector<2x128xf32>
    %c0_22 = arith.constant 0 : index
    %c0_23 = arith.constant 0 : index
    %54 = vector.load %arg4[%c0_22, %c0_23] : memref<128x64xf32, #tpu.memory_space<vmem>>, vector<128x64xf32>
    %cst_24 = arith.constant dense<0.000000e+00> : vector<2x64xf32>
    %55 = tpu.matmul %53, %54, %cst_24 {dimension_numbers = #tpu.dot_dimension_numbers<[1], [0], [0], [1], [0, 0, 1, 1], [], []>} : vector<2x128xf32>, vector<128x64xf32>, vector<2x64xf32> -> vector<2x64xf32>
    %56 = vector.broadcast %3 : vector<1x64xf32> to vector<2x64xf32>
    %57 = arith.addf %55, %56 : vector<2x64xf32>
    %cst_25 = arith.constant 0.000000e+00 : f32
    %58 = vector.broadcast %cst_25 : f32 to vector<2x64xf32>
    %59 = arith.maximumf %57, %58 : vector<2x64xf32>
    %60 = vector.broadcast %4 : vector<1x64xf32> to vector<2x64xf32>
    %61 = arith.mulf %59, %60 : vector<2x64xf32>
    %cst_26 = arith.constant dense<0.000000e+00> : vector<2xf32>
    %62 = vector.multi_reduction <add>, %61, %cst_26 [1] : vector<2x64xf32> to vector<2xf32>
    %63 = vector.shape_cast %62 : vector<2xf32> to vector<2x1xf32>
    %64 = vector.broadcast %5 : vector<1x1xf32> to vector<2x1xf32>
    %65 = arith.addf %63, %64 : vector<2x1xf32>
    %c0_27 = arith.constant 0 : index
    %c0_28 = arith.constant 0 : index
    %66 = vector.load %arg6[%c0_27, %c0_28] : memref<2x1xf32, #tpu.memory_space<vmem>>, vector<2x1xf32>
    tpu.vector_store %arg6[%c0_27, %c0_28], %65 {strides = array<i32>} : memref<2x1xf32, #tpu.memory_space<vmem>>, vector<2x1xf32>,
    return
  }
  func.func @transform_0(%arg0: i32) -> (i32, i32) {
    %c0_i32 = arith.constant 0 : i32
    %c0_i32_0 = arith.constant 0 : i32
    %c0_i32_1 = arith.constant 0 : i32
    return %c0_i32, %c0_i32_0 : i32, i32
  }
  func.func @transform_1(%arg0: i32) -> (i32, i32) {
    %c0_i32 = arith.constant 0 : i32
    %c0_i32_0 = arith.constant 0 : i32
    %c0_i32_1 = arith.constant 0 : i32
    return %c0_i32, %c0_i32_0 : i32, i32
  }
  func.func @transform_2(%arg0: i32) -> (i32, i32) {
    %c0_i32 = arith.constant 0 : i32
    %c0_i32_0 = arith.constant 0 : i32
    %c0_i32_1 = arith.constant 0 : i32
    return %c0_i32, %c0_i32_0 : i32, i32
  }
  func.func @transform_3(%arg0: i32) -> (i32, i32) {
    %c0_i32 = arith.constant 0 : i32
    %c0_i32_0 = arith.constant 0 : i32
    %c0_i32_1 = arith.constant 0 : i32
    return %c0_i32, %c0_i32_0 : i32, i32
  }
  func.func @transform_4(%arg0: i32) -> (i32, i32) {
    %c0_i32 = arith.constant 0 : i32
    %c0_i32_0 = arith.constant 0 : i32
    %c0_i32_1 = arith.constant 0 : i32
    return %c0_i32, %c0_i32_0 : i32, i32
  }
  func.func @transform_5(%arg0: i32) -> (i32, i32) {
    %c0_i32 = arith.constant 0 : i32
    %c0_i32_0 = arith.constant 0 : i32
    %c0_i32_1 = arith.constant 0 : i32
    return %c0_i32, %c0_i32_0 : i32, i32
  }
}

</mosaic_0001>

<llo_original>
// kernel: tpu_custom_call.1
$region0: #{tpu_custom_call.1}
  #allocation0 [shape = 'u32[]', space=smem, size = 0x4, offset = 0x4, fixed_abs, tag = 'smem constant byte address 0x4 - core index']
  #allocation1 [shape = 'u32[144,128]{1,0:T(1,128)}', space=vmem, size = 0x12000, scoped, tag = 'internal scratch']
  %s0 = inlined_call_operand.vmem [shape: f32[32,384], index: 0, kind: input, shape index: {}]
  %s1 = inlined_call_operand.vmem [shape: f32[384,64], index: 1, kind: input, shape index: {}]
  %s2 = inlined_call_operand.vmem [shape: f32[192,128], index: 2, kind: input, shape index: {}]
  %s3 = inlined_call_operand.vmem [shape: f32[128,64], index: 3, kind: input, shape index: {}]
  %s4 = inlined_call_operand.vmem [shape: f32[8,128], index: 4, kind: input, shape index: {}]
  %s5 = inlined_call_operand.vmem [shape: f32[2,1], index: 5, kind: output, shape index: {}]
  %s6 = sld [smem:[#allocation0]]
  $region30: #{tpu_custom_call.1} parent=0
    _
  %s8 = ssub.s32 1, %s6
  %s9 = scalar_select 0, %s8, %s6
  // Predicated region
  $region2: #{tpu_custom_call.1} parent=0 // pred_check
    _
  $region3: #{tpu_custom_call.1} parent=0 // pred_check_branch
    %11 = sbr.rel (0) target = $region5
  $region4: #{tpu_custom_call.1} parent=0 // pred_region
    _
  $region5: #{tpu_custom_call.1} parent=0 // pred_fallthru
    _
  // Predicated region
  $region6: #{tpu_custom_call.1} parent=0 // pred_check
    _
  $region7: #{tpu_custom_call.1} parent=0 // pred_check_branch
    %13 = sbr.rel (0) target = $region9
  $region8: #{tpu_custom_call.1} parent=0 // pred_region
    _
  $region9: #{tpu_custom_call.1} parent=0 // pred_fallthru
    _
  // Predicated region
  $region10: #{tpu_custom_call.1} parent=0 // pred_check
    _
  $region11: #{tpu_custom_call.1} parent=0 // pred_check_branch
    %15 = sbr.rel (0) target = $region13
  $region12: #{tpu_custom_call.1} parent=0 // pred_region
    _
  $region13: #{tpu_custom_call.1} parent=0 // pred_fallthru
    _
  // Predicated region
  $region14: #{tpu_custom_call.1} parent=0 // pred_check
    _
  $region15: #{tpu_custom_call.1} parent=0 // pred_check_branch
    %17 = sbr.rel (0) target = $region17
  $region16: #{tpu_custom_call.1} parent=0 // pred_region
    _
  $region17: #{tpu_custom_call.1} parent=0 // pred_fallthru
    _
  // Predicated region
  $region18: #{tpu_custom_call.1} parent=0 // pred_check
    _
  $region19: #{tpu_custom_call.1} parent=0 // pred_check_branch
    %19 = sbr.rel (0) target = $region21
  $region20: #{tpu_custom_call.1} parent=0 // pred_region
    _
  $region21: #{tpu_custom_call.1} parent=0 // pred_fallthru
    _
  %v20 = vld [vmem:[%s4] sm:$0xff]
  %v21 = vld [vmem:[%s0] sm:$0xff]
  %v22 = vld [vmem:[%s0 + $0x8] sm:$0xff]
  %v23 = vld [vmem:[%s0 + $0x10] sm:$0xff]
  %v24 = vld [vmem:[%s0 + $0x18] sm:$0xff]
  %v25 = vld [vmem:[%s0 + $0x20] sm:$0xff]
  %v26 = vld [vmem:[%s0 + $0x28] sm:$0xff]
  %v27 = vld [vmem:[%s0 + $0x30] sm:$0xff]
  %v28 = vld [vmem:[%s0 + $0x38] sm:$0xff]
  %v29 = vld [vmem:[%s0 + $0x40] sm:$0xff]
  %v30 = vld [vmem:[%s0 + $0x48] sm:$0xff]
  %v31 = vld [vmem:[%s0 + $0x50] sm:$0xff]
  %v32 = vld [vmem:[%s0 + $0x58] sm:$0xff]
  %v33 = vld [vmem:[%s1] sm:$0xff]
  %v34 = vld [vmem:[%s1 + $0x8] sm:$0xff]
  %v35 = vld [vmem:[%s1 + $0x10] sm:$0xff]
  %v36 = vld [vmem:[%s1 + $0x18] sm:$0xff]
  %v37 = vld [vmem:[%s1 + $0x20] sm:$0xff]
  %v38 = vld [vmem:[%s1 + $0x28] sm:$0xff]
  %v39 = vld [vmem:[%s1 + $0x30] sm:$0xff]
  %v40 = vld [vmem:[%s1 + $0x38] sm:$0xff]
  %v41 = vld [vmem:[%s1 + $0x40] sm:$0xff]
  %v42 = vld [vmem:[%s1 + $0x48] sm:$0xff]
  %v43 = vld [vmem:[%s1 + $0x50] sm:$0xff]
  %v44 = vld [vmem:[%s1 + $0x58] sm:$0xff]
  %v45 = vld [vmem:[%s1 + $0x60] sm:$0xff]
  %v46 = vld [vmem:[%s1 + $0x68] sm:$0xff]
  %v47 = vld [vmem:[%s1 + $0x70] sm:$0xff]
  %v48 = vld [vmem:[%s1 + $0x78] sm:$0xff]
  %v49 = vld [vmem:[%s1 + $0x80] sm:$0xff]
  %v50 = vld [vmem:[%s1 + $0x88] sm:$0xff]
  %v51 = vld [vmem:[%s1 + $0x90] sm:$0xff]
  %v52 = vld [vmem:[%s1 + $0x98] sm:$0xff]
  %v53 = vld [vmem:[%s1 + $0xa0] sm:$0xff]
  %v54 = vld [vmem:[%s1 + $0xa8] sm:$0xff]
  %v55 = vld [vmem:[%s1 + $0xb0] sm:$0xff]
  %v56 = vld [vmem:[%s1 + $0xb8] sm:$0xff]
  %v57 = vld [vmem:[%s1 + $0xc0] sm:$0xff]
  %v58 = vld [vmem:[%s1 + $0xc8] sm:$0xff]
  %v59 = vld [vmem:[%s1 + $0xd0] sm:$0xff]
  %v60 = vld [vmem:[%s1 + $0xd8] sm:$0xff]
  %v61 = vld [vmem:[%s1 + $0xe0] sm:$0xff]
  %v62 = vld [vmem:[%s1 + $0xe8] sm:$0xff]
  %v63 = vld [vmem:[%s1 + $0xf0] sm:$0xff]
  %v64 = vld [vmem:[%s1 + $0xf8] sm:$0xff]
  %v65 = vld [vmem:[%s1 + $0x100] sm:$0xff]
  %v66 = vld [vmem:[%s1 + $0x108] sm:$0xff]
  %v67 = vld [vmem:[%s1 + $0x110] sm:$0xff]
  %v68 = vld [vmem:[%s1 + $0x118] sm:$0xff]
  %v69 = vld [vmem:[%s1 + $0x120] sm:$0xff]
  %v70 = vld [vmem:[%s1 + $0x128] sm:$0xff]
  %v71 = vld [vmem:[%s1 + $0x130] sm:$0xff]
  %v72 = vld [vmem:[%s1 + $0x138] sm:$0xff]
  %v73 = vld [vmem:[%s1 + $0x140] sm:$0xff]
  %v74 = vld [vmem:[%s1 + $0x148] sm:$0xff]
  %v75 = vld [vmem:[%s1 + $0x150] sm:$0xff]
  %v76 = vld [vmem:[%s1 + $0x158] sm:$0xff]
  %v77 = vld [vmem:[%s1 + $0x160] sm:$0xff]
  %v78 = vld [vmem:[%s1 + $0x168] sm:$0xff]
  %v79 = vld [vmem:[%s1 + $0x170] sm:$0xff]
  %v80 = vld [vmem:[%s1 + $0x178] sm:$0xff]
  %v81 = vlaneseq
  %v82 = vshrl.u32 %v81, 7
  %v83 = vsub.s32 0, %v82
  %v84 = vrot.slane %v20, %v83
  %85 = vmatprep.subr.mxu0 0.0
  %86 = vmatpush1.msra.mxu0 %v33
  %87 = vmatprep.subr.mxu0 0.0
  %88 = vmatpush1.msra.mxu0 %v34
  %89 = vmatprep.subr.mxu0 0.0
  %90 = vmatpush1.msra.mxu0 %v35
  %91 = vmatprep.subr.mxu0 0.0
  %92 = vmatpush1.msra.mxu0 %v36
  %93 = vmatprep.subr.mxu0 0.0
  %94 = vmatpush1.msra.mxu0 %v37
  %95 = vmatprep.subr.mxu0 0.0
  %96 = vmatpush1.msra.mxu0 %v38
  %97 = vmatprep.subr.mxu0 0.0
  %98 = vmatpush1.msra.mxu0 %v39
  %99 = vmatprep.subr.mxu0 0.0
  %100 = vmatpush1.msra.mxu0 %v40
  %101 = vmatprep.subr.mxu0 0.0
  %102 = vmatpush1.msra.mxu0 %v41
  %103 = vmatprep.subr.mxu0 0.0
  %104 = vmatpush1.msra.mxu0 %v42
  %105 = vmatprep.subr.mxu0 0.0
  %106 = vmatpush1.msra.mxu0 %v43
  %107 = vmatprep.subr.mxu0 0.0
  %108 = vmatpush1.msra.mxu0 %v44
  %109 = vmatprep.subr.mxu0 0.0
  %110 = vmatpush1.msra.mxu0 %v45
  %111 = vmatprep.subr.mxu0 0.0
  %112 = vmatpush1.msra.mxu0 %v46
  %113 = vmatprep.subr.mxu0 0.0
  %114 = vmatpush1.msra.mxu0 %v47
  %115 = vmatprep.subr.mxu0 0.0
  %116 = vmatpush1.msra.mxu0 %v48
  %117 = vmatprep.subr.mxu0 0.0
  %118 = vmatpush1.msra.mxu0 %v49
  %119 = vmatprep.subr.mxu0 0.0
  %120 = vmatpush1.msra.mxu0 %v50
  %121 = vmatprep.subr.mxu0 0.0
  %122 = vmatpush1.msra.mxu0 %v51
  %123 = vmatprep.subr.mxu0 0.0
  %124 = vmatpush1.msra.mxu0 %v52
  %125 = vmatprep.subr.mxu0 0.0
  %126 = vmatpush1.msra.mxu0 %v53
  %127 = vmatprep.subr.mxu0 0.0
  %128 = vmatpush1.msra.mxu0 %v54
  %129 = vmatprep.subr.mxu0 0.0
  %130 = vmatpush1.msra.mxu0 %v55
  %131 = vmatprep.subr.mxu0 0.0
  %132 = vmatpush1.msra.mxu0 %v56
  %133 = vmatprep.subr.mxu0 0.0
  %134 = vmatpush1.msra.mxu0 %v57
  %135 = vmatprep.subr.mxu0 0.0
  %136 = vmatpush1.msra.mxu0 %v58
  %137 = vmatprep.subr.mxu0 0.0
  %138 = vmatpush1.msra.mxu0 %v59
  %139 = vmatprep.subr.mxu0 0.0
  %140 = vmatpush1.msra.mxu0 %v60
  %141 = vmatprep.subr.mxu0 0.0
  %142 = vmatpush1.msra.mxu0 %v61
  %143 = vmatprep.subr.mxu0 0.0
  %144 = vmatpush1.msra.mxu0 %v62
  %145 = vmatprep.subr.mxu0 0.0
  %146 = vmatpush1.msra.mxu0 %v63
  %147 = vmatprep.subr.mxu0 0.0
  %148 = vmatpush1.msra.mxu0 %v64
  %149 = vmatprep.mubr.f32.mxu0 %v22
  %150 = vmatmul.mubr.f32.gmra.mrb[0].mxu0 %v21
  %v151 = vpop.f32.mrb[0].mxu0
  %v152 = vadd.f32 %v84, %v151
  %v153 = vpop.f32.mrb[0].mxu0
  %154 = vmatprep.mubr.f32.mxu0 %v25
  %155 = vmatmul.mubr.f32.gmra.mrb[0].mxu0 %v24
  %v156 = vpop.f32.mrb[0].mxu0
  %v157 = vadd.f32 %v84, %v156
  %v158 = vpop.f32.mrb[0].mxu0
  %159 = vmatprep.mubr.f32.mxu0 %v28
  %160 = vmatmul.mubr.f32.gmra.mrb[0].mxu0 %v27
  %v161 = vpop.f32.mrb[0].mxu0
  %v162 = vadd.f32 %v84, %v161
  %v163 = vpop.f32.mrb[0].mxu0
  %164 = vmatprep.mubr.f32.mxu0 %v31
  %165 = vmatmul.mubr.f32.gmra.mrb[0].mxu0 %v30
  %v166 = vpop.f32.mrb[0].mxu0
  %v167 = vadd.f32 %v84, %v166
  %v168 = vpop.f32.mrb[0].mxu0
  %169 = vdwg.mxu0
  %170 = vmatprep.subr.mxu0 0.0
  %171 = vmatpush1.msra.mxu0 %v65
  %172 = vmatprep.subr.mxu0 0.0
  %173 = vmatpush1.msra.mxu0 %v66
  %174 = vmatprep.subr.mxu0 0.0
  %175 = vmatpush1.msra.mxu0 %v67
  %176 = vmatprep.subr.mxu0 0.0
  %177 = vmatpush1.msra.mxu0 %v68
  %178 = vmatprep.subr.mxu0 0.0
  %179 = vmatpush1.msra.mxu0 %v69
  %180 = vmatprep.subr.mxu0 0.0
  %181 = vmatpush1.msra.mxu0 %v70
  %182 = vmatprep.subr.mxu0 0.0
  %183 = vmatpush1.msra.mxu0 %v71
  %184 = vmatprep.subr.mxu0 0.0
  %185 = vmatpush1.msra.mxu0 %v72
  %186 = vmatprep.subr.mxu0 0.0
  %187 = vmatpush1.msra.mxu0 %v73
  %188 = vmatprep.subr.mxu0 0.0
  %189 = vmatpush1.msra.mxu0 %v74
  %190 = vmatprep.subr.mxu0 0.0
  %191 = vmatpush1.msra.mxu0 %v75
  %192 = vmatprep.subr.mxu0 0.0
  %193 = vmatpush1.msra.mxu0 %v76
  %194 = vmatprep.subr.mxu0 0.0
  %195 = vmatpush1.msra.mxu0 %v77
  %196 = vmatprep.subr.mxu0 0.0
  %197 = vmatpush1.msra.mxu0 %v78
  %198 = vmatprep.subr.mxu0 0.0
  %199 = vmatpush1.msra.mxu0 %v79
  %200 = vmatprep.subr.mxu0 0.0
  %201 = vmatpush1.msra.mxu0 %v80
  %202 = vmatprep.subr.mxu0 0.0
  %203 = vmatpush1.msra.mxu0 0.0
  %204 = vmatprep.subr.mxu0 0.0
  %205 = vmatpush1.msra.mxu0 0.0
  %206 = vmatprep.subr.mxu0 0.0
  %207 = vmatpush1.msra.mxu0 0.0
  %208 = vmatprep.subr.mxu0 0.0
  %209 = vmatpush1.msra.mxu0 0.0
  %210 = vmatprep.subr.mxu0 0.0
  %211 = vmatpush1.msra.mxu0 0.0
  %212 = vmatprep.subr.mxu0 0.0
  %213 = vmatpush1.msra.mxu0 0.0
  %214 = vmatprep.subr.mxu0 0.0
  %215 = vmatpush1.msra.mxu0 0.0
  %216 = vmatprep.subr.mxu0 0.0
  %217 = vmatpush1.msra.mxu0 0.0
  %218 = vmatprep.subr.mxu0 0.0
  %219 = vmatpush1.msra.mxu0 0.0
  %220 = vmatprep.subr.mxu0 0.0
  %221 = vmatpush1.msra.mxu0 0.0
  %222 = vmatprep.subr.mxu0 0.0
  %223 = vmatpush1.msra.mxu0 0.0
  %224 = vmatprep.subr.mxu0 0.0
  %225 = vmatpush1.msra.mxu0 0.0
  %226 = vmatprep.subr.mxu0 0.0
  %227 = vmatpush1.msra.mxu0 0.0
  %228 = vmatprep.subr.mxu0 0.0
  %229 = vmatpush1.msra.mxu0 0.0
  %230 = vmatprep.subr.mxu0 0.0
  %231 = vmatpush1.msra.mxu0 0.0
  %232 = vmatprep.subr.mxu0 0.0
  %233 = vmatpush1.msra.mxu0 0.0
  %234 = vmatprep.mubr.f32.mxu0 0.0
  %235 = vmatmul.mubr.f32.gmra.mrb[0].mxu0 %v23
  %v236 = vpop.f32.mrb[0].mxu0
  %v237 = vadd.f32 %v152, %v236
  %v238 = vpop.f32.mrb[0].mxu0
  %239 = vmatprep.mubr.f32.mxu0 0.0
  %240 = vmatmul.mubr.f32.gmra.mrb[0].mxu0 %v26
  %v241 = vpop.f32.mrb[0].mxu0
  %v242 = vadd.f32 %v157, %v241
  %v243 = vpop.f32.mrb[0].mxu0
  %244 = vmatprep.mubr.f32.mxu0 0.0
  %245 = vmatmul.mubr.f32.gmra.mrb[0].mxu0 %v29
  %v246 = vpop.f32.mrb[0].mxu0
  %v247 = vadd.f32 %v162, %v246
  %v248 = vpop.f32.mrb[0].mxu0
  %249 = vmatprep.mubr.f32.mxu0 0.0
  %250 = vmatmul.mubr.f32.gmra.mrb[0].mxu0 %v32
  %v251 = vpop.f32.mrb[0].mxu0
  %v252 = vadd.f32 %v167, %v251
  %v253 = vpop.f32.mrb[0].mxu0
  %254 = vdwg.mxu0
  %v255 = vmax.f32 %v237, 0.0
  %v256 = vmax.f32 %v242, 0.0
  %v257 = vmax.f32 %v247, 0.0
  %v258 = vmax.f32 %v252, 0.0
  %v259 = vlaneseq
  %v260 = vshrl.u32 %v259, 7
  %v261 = vadd.s32 %v260, 8
  %v262 = vadd.s32 %v260, 16
  %v263 = vadd.s32 %v260, 24
  %vm264 = vcmp.lt.s32.totalorder %v260, 0
  %v265 = vsub.s32 0, %v260
  %v266 = vsel %vm264, %v265, %v260
  %v267 = vshrl.u32 %v266, 4
  %v268 = vand.u32 %v266, 15
  %v269 = vsub.s32 0, %v268
  %v270 = vsel %vm264, %v269, %v268
  %vm271 = vcmp.lt.s32.totalorder %v261, 0
  %v272 = vsub.s32 0, %v261
  %v273 = vsel %vm271, %v272, %v261
  %v274 = vshrl.u32 %v273, 4
  %v275 = vand.u32 %v273, 15
  %v276 = vsub.s32 0, %v275
  %v277 = vsel %vm271, %v276, %v275
  %vm278 = vcmp.lt.s32.totalorder %v262, 0
  %v279 = vsub.s32 0, %v262
  %v280 = vsel %vm278, %v279, %v262
  %v281 = vshrl.u32 %v280, 4
  %v282 = vand.u32 %v280, 15
  %v283 = vsub.s32 0, %v282
  %v284 = vsel %vm278, %v283, %v282
  %vm285 = vcmp.lt.s32.totalorder %v263, 0
  %v286 = vsub.s32 0, %v263
  %v287 = vsel %vm285, %v286, %v263
  %v288 = vshrl.u32 %v287, 4
  %v289 = vand.u32 %v287, 15
  %v290 = vsub.s32 0, %v289
  %v291 = vsel %vm285, %v290, %v289
  %vm292 = vcmp.ne.s32.totalorder %v270, 0
  %vm293 = vcmp.ne.s32.totalorder %v277, 0
  %vm294 = vcmp.ne.s32.totalorder %v284, 0
  %vm295 = vcmp.ne.s32.totalorder %v291, 0
  %vm296 = vcmp.lt.s32.totalorder %v270, 0
  %vm297 = vcmp.lt.s32.totalorder %v277, 0
  %vm298 = vcmp.lt.s32.totalorder %v284, 0
  %vm299 = vcmp.lt.s32.totalorder %v291, 0
  %vm300 = vmand %vm296, %vm292
  %vm301 = vmand %vm297, %vm293
  %vm302 = vmand %vm298, %vm294
  %vm303 = vmand %vm299, %vm295
  %v304 = vadd.s32 %v270, 16
  %v305 = vadd.s32 %v277, 16
  %v306 = vadd.s32 %v284, 16
  %v307 = vadd.s32 %v291, 16
  %v308 = vsel %vm300, %v304, %v270
  %v309 = vsel %vm301, %v305, %v277
  %v310 = vsel %vm302, %v306, %v284
  %v311 = vsel %vm303, %v307, %v291
  %vm312 = vcmp.eq.s32.totalorder %v308, 0
  %vm313 = vcmp.eq.s32.totalorder %v309, 0
  %vm314 = vcmp.eq.s32.totalorder %v310, 0
  %vm315 = vcmp.eq.s32.totalorder %v311, 0
  %v316 = vrot.slane %v255, 7
  %v317 = vrot.slane %v256, 7
  %v318 = vrot.slane %v257, 7
  %v319 = vrot.slane %v258, 7
  %vm320 = vcmp.lt.s32.totalorder %v260, 1
  %v321 = vsel %vm320, %v318, %v319
  %v322 = vsel %vm320, %v317, %v318
  %v323 = vsel %vm320, %v316, %v317
  %v324 = vsel %vm320, %v319, %v316
  %v325 = vsel %vm312, 0.0, %v324
  %v326 = vsel %vm313, 0.0, %v323
  %v327 = vsel %vm314, 0.0, %v322
  %v328 = vsel %vm315, 0.0, %v321
  %vm329 = vcmp.eq.s32.totalorder %v308, 15
  %vm330 = vcmp.eq.s32.totalorder %v309, 15
  %vm331 = vcmp.eq.s32.totalorder %v310, 15
  %vm332 = vcmp.eq.s32.totalorder %v311, 15
  %v333 = vrot.slane %v255, 1
  %v334 = vrot.slane %v256, 1
  %v335 = vrot.slane %v257, 1
  %v336 = vrot.slane %v258, 1
  %vm337 = vcmp.lt.s32.totalorder %v260, 7
  %v338 = vsel %vm337, %v335, %v336
  %v339 = vsel %vm337, %v334, %v335
  %v340 = vsel %vm337, %v333, %v334
  %v341 = vsel %vm337, %v336, %v333
  %v342 = vsel %vm329, 0.0, %v340
  %v343 = vsel %vm330, 0.0, %v339
  %v344 = vsel %vm331, 0.0, %v338
  %v345 = vsel %vm332, 0.0, %v341
  %v346 = vld [vmem:[%s2] sm:$0xff]
  %v347 = vld [vmem:[%s2 + $0x8] sm:$0xff]
  %v348 = vld [vmem:[%s2 + $0x10] sm:$0xff]
  %v349 = vld [vmem:[%s2 + $0x18] sm:$0xff]
  %v350 = vld [vmem:[%s2 + $0x20] sm:$0xff]
  %v351 = vld [vmem:[%s2 + $0x28] sm:$0xff]
  %v352 = vld [vmem:[%s2 + $0x30] sm:$0xff]
  %v353 = vld [vmem:[%s2 + $0x38] sm:$0xff]
  %v354 = vld [vmem:[%s2 + $0x40] sm:$0xff]
  %v355 = vld [vmem:[%s2 + $0x48] sm:$0xff]
  %v356 = vld [vmem:[%s2 + $0x50] sm:$0xff]
  %v357 = vld [vmem:[%s2 + $0x58] sm:$0xff]
  %v358 = vld [vmem:[%s2 + $0x60] sm:$0xff]
  %v359 = vld [vmem:[%s2 + $0x68] sm:$0xff]
  %v360 = vld [vmem:[%s2 + $0x70] sm:$0xff]
  %v361 = vld [vmem:[%s2 + $0x78] sm:$0xff]
  %vm362 = vcmask 523264
  %v364 = vsel %vm362, %v255, 0
  %v367 = vsel %vm362, %v256, 0
  %v370 = vsel %vm362, %v257, 0
  %v373 = vsel %vm362, %v258, 0
  %375 = vmatprep.subr.mxu0 0.0
  %376 = vmatpush1.msra.mxu0 %v354
  %377 = vmatprep.subr.mxu0 0.0
  %378 = vmatpush1.msra.mxu0 %v355
  %379 = vmatprep.subr.mxu0 0.0
  %380 = vmatpush1.msra.mxu0 %v356
  %381 = vmatprep.subr.mxu0 0.0
  %382 = vmatpush1.msra.mxu0 %v357
  %383 = vmatprep.subr.mxu0 0.0
  %384 = vmatpush1.msra.mxu0 %v358
  %385 = vmatprep.subr.mxu0 0.0
  %386 = vmatpush1.msra.mxu0 %v359
  %387 = vmatprep.subr.mxu0 0.0
  %388 = vmatpush1.msra.mxu0 %v360
  %389 = vmatprep.subr.mxu0 0.0
  %390 = vmatpush1.msra.mxu0 %v361
  %391 = vmatprep.subr.mxu0 0.0
  %392 = vmatpush1.msra.mxu0 0.0
  %393 = vmatprep.subr.mxu0 0.0
  %394 = vmatpush1.msra.mxu0 0.0
  %395 = vmatprep.subr.mxu0 0.0
  %396 = vmatpush1.msra.mxu0 0.0
  %397 = vmatprep.subr.mxu0 0.0
  %398 = vmatpush1.msra.mxu0 0.0
  %399 = vmatprep.subr.mxu0 0.0
  %400 = vmatpush1.msra.mxu0 0.0
  %401 = vmatprep.subr.mxu0 0.0
  %402 = vmatpush1.msra.mxu0 0.0
  %403 = vmatprep.subr.mxu0 0.0
  %404 = vmatpush1.msra.mxu0 0.0
  %405 = vmatprep.subr.mxu0 0.0
  %406 = vmatpush1.msra.mxu0 0.0
  %407 = vmatprep.subr.mxu0 0.0
  %408 = vmatpush1.msra.mxu0 0.0
  %409 = vmatprep.subr.mxu0 0.0
  %410 = vmatpush1.msra.mxu0 0.0
  %411 = vmatprep.subr.mxu0 0.0
  %412 = vmatpush1.msra.mxu0 0.0
  %413 = vmatprep.subr.mxu0 0.0
  %414 = vmatpush1.msra.mxu0 0.0
  %415 = vmatprep.subr.mxu0 0.0
  %416 = vmatpush1.msra.mxu0 0.0
  %417 = vmatprep.subr.mxu0 0.0
  %418 = vmatpush1.msra.mxu0 0.0
  %419 = vmatprep.subr.mxu0 0.0
  %420 = vmatpush1.msra.mxu0 0.0
  %421 = vmatprep.subr.mxu0 0.0
  %422 = vmatpush1.msra.mxu0 0.0
  %423 = vmatprep.subr.mxu0 0.0
  %424 = vmatpush1.msra.mxu0 0.0
  %425 = vmatprep.subr.mxu0 0.0
  %426 = vmatpush1.msra.mxu0 0.0
  %427 = vmatprep.subr.mxu0 0.0
  %428 = vmatpush1.msra.mxu0 0.0
  %429 = vmatprep.subr.mxu0 0.0
  %430 = vmatpush1.msra.mxu0 0.0
  %431 = vmatprep.subr.mxu0 0.0
  %432 = vmatpush1.msra.mxu0 0.0
  %433 = vmatprep.subr.mxu0 0.0
  %434 = vmatpush1.msra.mxu0 0.0
  %435 = vmatprep.subr.mxu0 0.0
  %436 = vmatpush1.msra.mxu0 0.0
  %437 = vmatprep.subr.mxu0 0.0
  %438 = vmatpush1.msra.mxu0 0.0
  %439 = vmatprep.mubr.f32.mxu0 0.0
  %440 = vmatmul.mubr.f32.gmra.mrb[0].mxu0 %v364
  %v441 = vpop.f32.mrb[0].mxu0
  %v442 = vadd.f32 0.0, %v441
  %v443 = vpop.f32.mrb[0].mxu0
  %444 = vmatprep.mubr.f32.mxu0 0.0
  %445 = vmatmul.mubr.f32.gmra.mrb[0].mxu0 %v367
  %v446 = vpop.f32.mrb[0].mxu0
  %v447 = vadd.f32 0.0, %v446
  %v448 = vpop.f32.mrb[0].mxu0
  %449 = vmatprep.mubr.f32.mxu0 0.0
  %450 = vmatmul.mubr.f32.gmra.mrb[0].mxu0 %v370
  %v451 = vpop.f32.mrb[0].mxu0
  %v452 = vadd.f32 0.0, %v451
  %v453 = vpop.f32.mrb[0].mxu0
  %454 = vmatprep.mubr.f32.mxu0 0.0
  %455 = vmatmul.mubr.f32.gmra.mrb[0].mxu0 %v373
  %v456 = vpop.f32.mrb[0].mxu0
  %v457 = vadd.f32 0.0, %v456
  %v458 = vpop.f32.mrb[0].mxu0
  %459 = vdwg.mxu0
  %v461 = vsel %vm362, %v325, 0
  %v464 = vsel %vm362, %v326, 0
  %v467 = vsel %vm362, %v327, 0
  %v470 = vsel %vm362, %v328, 0
  %472 = vmatprep.subr.mxu0 0.0
  %473 = vmatpush1.msra.mxu0 %v346
  %474 = vmatprep.subr.mxu0 0.0
  %475 = vmatpush1.msra.mxu0 %v347
  %476 = vmatprep.subr.mxu0 0.0
  %477 = vmatpush1.msra.mxu0 %v348
  %478 = vmatprep.subr.mxu0 0.0
  %479 = vmatpush1.msra.mxu0 %v349
  %480 = vmatprep.subr.mxu0 0.0
  %481 = vmatpush1.msra.mxu0 %v350
  %482 = vmatprep.subr.mxu0 0.0
  %483 = vmatpush1.msra.mxu0 %v351
  %484 = vmatprep.subr.mxu0 0.0
  %485 = vmatpush1.msra.mxu0 %v352
  %486 = vmatprep.subr.mxu0 0.0
  %487 = vmatpush1.msra.mxu0 %v353
  %488 = vmatprep.subr.mxu0 0.0
  %489 = vmatpush1.msra.mxu0 0.0
  %490 = vmatprep.subr.mxu0 0.0
  %491 = vmatpush1.msra.mxu0 0.0
  %492 = vmatprep.subr.mxu0 0.0
  %493 = vmatpush1.msra.mxu0 0.0
  %494 = vmatprep.subr.mxu0 0.0
  %495 = vmatpush1.msra.mxu0 0.0
  %496 = vmatprep.subr.mxu0 0.0
  %497 = vmatpush1.msra.mxu0 0.0
  %498 = vmatprep.subr.mxu0 0.0
  %499 = vmatpush1.msra.mxu0 0.0
  %500 = vmatprep.subr.mxu0 0.0
  %501 = vmatpush1.msra.mxu0 0.0
  %502 = vmatprep.subr.mxu0 0.0
  %503 = vmatpush1.msra.mxu0 0.0
  %504 = vmatprep.subr.mxu0 0.0
  %505 = vmatpush1.msra.mxu0 0.0
  %506 = vmatprep.subr.mxu0 0.0
  %507 = vmatpush1.msra.mxu0 0.0
  %508 = vmatprep.subr.mxu0 0.0
  %509 = vmatpush1.msra.mxu0 0.0
  %510 = vmatprep.subr.mxu0 0.0
  %511 = vmatpush1.msra.mxu0 0.0
  %512 = vmatprep.subr.mxu0 0.0
  %513 = vmatpush1.msra.mxu0 0.0
  %514 = vmatprep.subr.mxu0 0.0
  %515 = vmatpush1.msra.mxu0 0.0
  %516 = vmatprep.subr.mxu0 0.0
  %517 = vmatpush1.msra.mxu0 0.0
  %518 = vmatprep.subr.mxu0 0.0
  %519 = vmatpush1.msra.mxu0 0.0
  %520 = vmatprep.subr.mxu0 0.0
  %521 = vmatpush1.msra.mxu0 0.0
  %522 = vmatprep.subr.mxu0 0.0
  %523 = vmatpush1.msra.mxu0 0.0
  %524 = vmatprep.subr.mxu0 0.0
  %525 = vmatpush1.msra.mxu0 0.0
  %526 = vmatprep.subr.mxu0 0.0
  %527 = vmatpush1.msra.mxu0 0.0
  %528 = vmatprep.subr.mxu0 0.0
  %529 = vmatpush1.msra.mxu0 0.0
  %530 = vmatprep.subr.mxu0 0.0
  %531 = vmatpush1.msra.mxu0 0.0
  %532 = vmatprep.subr.mxu0 0.0
  %533 = vmatpush1.msra.mxu0 0.0
  %534 = vmatprep.subr.mxu0 0.0
  %535 = vmatpush1.msra.mxu0 0.0
  %536 = vmatprep.mubr.f32.mxu0 0.0
  %537 = vmatmul.mubr.f32.gmra.mrb[0].mxu0 %v461
  %v538 = vpop.f32.mrb[0].mxu0
  %v539 = vadd.f32 %v442, %v538
  %v540 = vpop.f32.mrb[0].mxu0
  %541 = vmatprep.mubr.f32.mxu0 0.0
  %542 = vmatmul.mubr.f32.gmra.mrb[0].mxu0 %v464
  %v543 = vpop.f32.mrb[0].mxu0
  %v544 = vadd.f32 %v447, %v543
  %v545 = vpop.f32.mrb[0].mxu0
  %546 = vmatprep.mubr.f32.mxu0 0.0
  %547 = vmatmul.mubr.f32.gmra.mrb[0].mxu0 %v467
  %v548 = vpop.f32.mrb[0].mxu0
  %v549 = vadd.f32 %v452, %v548
  %v550 = vpop.f32.mrb[0].mxu0
  %551 = vmatprep.mubr.f32.mxu0 0.0
  %552 = vmatmul.mubr.f32.gmra.mrb[0].mxu0 %v470
  %v553 = vpop.f32.mrb[0].mxu0
  %v554 = vadd.f32 %v457, %v553
  %v555 = vpop.f32.mrb[0].mxu0
  %556 = vdwg.mxu0
  %v557 = vld [vmem:[%s2 + $0x80] sm:$0xff]
  %v558 = vld [vmem:[%s2 + $0x88] sm:$0xff]
  %v559 = vld [vmem:[%s2 + $0x90] sm:$0xff]
  %v560 = vld [vmem:[%s2 + $0x98] sm:$0xff]
  %v561 = vld [vmem:[%s2 + $0xa0] sm:$0xff]
  %v562 = vld [vmem:[%s2 + $0xa8] sm:$0xff]
  %v563 = vld [vmem:[%s2 + $0xb0] sm:$0xff]
  %v564 = vld [vmem:[%s2 + $0xb8] sm:$0xff]
  %v566 = vsel %vm362, %v342, 0
  %v569 = vsel %vm362, %v343, 0
  %v572 = vsel %vm362, %v344, 0
  %v575 = vsel %vm362, %v345, 0
  %577 = vmatprep.subr.mxu0 0.0
  %578 = vmatpush1.msra.mxu0 %v557
  %579 = vmatprep.subr.mxu0 0.0
  %580 = vmatpush1.msra.mxu0 %v558
  %581 = vmatprep.subr.mxu0 0.0
  %582 = vmatpush1.msra.mxu0 %v559
  %583 = vmatprep.subr.mxu0 0.0
  %584 = vmatpush1.msra.mxu0 %v560
  %585 = vmatprep.subr.mxu0 0.0
  %586 = vmatpush1.msra.mxu0 %v561
  %587 = vmatprep.subr.mxu0 0.0
  %588 = vmatpush1.msra.mxu0 %v562
  %589 = vmatprep.subr.mxu0 0.0
  %590 = vmatpush1.msra.mxu0 %v563
  %591 = vmatprep.subr.mxu0 0.0
  %592 = vmatpush1.msra.mxu0 %v564
  %593 = vmatprep.subr.mxu0 0.0
  %594 = vmatpush1.msra.mxu0 0.0
  %595 = vmatprep.subr.mxu0 0.0
  %596 = vmatpush1.msra.mxu0 0.0
  %597 = vmatprep.subr.mxu0 0.0
  %598 = vmatpush1.msra.mxu0 0.0
  %599 = vmatprep.subr.mxu0 0.0
  %600 = vmatpush1.msra.mxu0 0.0
  %601 = vmatprep.subr.mxu0 0.0
  %602 = vmatpush1.msra.mxu0 0.0
  %603 = vmatprep.subr.mxu0 0.0
  %604 = vmatpush1.msra.mxu0 0.0
  %605 = vmatprep.subr.mxu0 0.0
  %606 = vmatpush1.msra.mxu0 0.0
  %607 = vmatprep.subr.mxu0 0.0
  %608 = vmatpush1.msra.mxu0 0.0
  %609 = vmatprep.subr.mxu0 0.0
  %610 = vmatpush1.msra.mxu0 0.0
  %611 = vmatprep.subr.mxu0 0.0
  %612 = vmatpush1.msra.mxu0 0.0
  %613 = vmatprep.subr.mxu0 0.0
  %614 = vmatpush1.msra.mxu0 0.0
  %615 = vmatprep.subr.mxu0 0.0
  %616 = vmatpush1.msra.mxu0 0.0
  %617 = vmatprep.subr.mxu0 0.0
  %618 = vmatpush1.msra.mxu0 0.0
  %619 = vmatprep.subr.mxu0 0.0
  %620 = vmatpush1.msra.mxu0 0.0
  %621 = vmatprep.subr.mxu0 0.0
  %622 = vmatpush1.msra.mxu0 0.0
  %623 = vmatprep.subr.mxu0 0.0
  %624 = vmatpush1.msra.mxu0 0.0
  %625 = vmatprep.subr.mxu0 0.0
  %626 = vmatpush1.msra.mxu0 0.0
  %627 = vmatprep.subr.mxu0 0.0
  %628 = vmatpush1.msra.mxu0 0.0
  %629 = vmatprep.subr.mxu0 0.0
  %630 = vmatpush1.msra.mxu0 0.0
  %631 = vmatprep.subr.mxu0 0.0
  %632 = vmatpush1.msra.mxu0 0.0
  %633 = vmatprep.subr.mxu0 0.0
  %634 = vmatpush1.msra.mxu0 0.0
  %635 = vmatprep.subr.mxu0 0.0
  %636 = vmatpush1.msra.mxu0 0.0
  %637 = vmatprep.subr.mxu0 0.0
  %638 = vmatpush1.msra.mxu0 0.0
  %639 = vmatprep.subr.mxu0 0.0
  %640 = vmatpush1.msra.mxu0 0.0
  %641 = vmatprep.mubr.f32.mxu0 0.0
  %642 = vmatmul.mubr.f32.gmra.mrb[0].mxu0 %v566
  %v643 = vpop.f32.mrb[0].mxu0
  %v644 = vadd.f32 0.0, %v643
  %v645 = vpop.f32.mrb[0].mxu0
  %646 = vmatprep.mubr.f32.mxu0 0.0
  %647 = vmatmul.mubr.f32.gmra.mrb[0].mxu0 %v569
  %v648 = vpop.f32.mrb[0].mxu0
  %v649 = vadd.f32 0.0, %v648
  %v650 = vpop.f32.mrb[0].mxu0
  %651 = vmatprep.mubr.f32.mxu0 0.0
  %652 = vmatmul.mubr.f32.gmra.mrb[0].mxu0 %v572
  %v653 = vpop.f32.mrb[0].mxu0
  %v654 = vadd.f32 0.0, %v653
  %v655 = vpop.f32.mrb[0].mxu0
  %656 = vmatprep.mubr.f32.mxu0 0.0
  %657 = vmatmul.mubr.f32.gmra.mrb[0].mxu0 %v575
  %v658 = vpop.f32.mrb[0].mxu0
  %v659 = vadd.f32 0.0, %v658
  %v660 = vpop.f32.mrb[0].mxu0
  %661 = vdwg.mxu0
  %v662 = vadd.f32 %v539, %v644
  %v663 = vadd.f32 %v544, %v649
  %v664 = vadd.f32 %v549, %v654
  %v665 = vadd.f32 %v554, %v659
  %v666 = vlaneseq
  %v667 = vshrl.u32 %v666, 7
  %v668 = vsub.s32 1, %v667
  %v669 = vrot.slane %v20, %v668
  %v670 = vadd.f32 %v662, %v669
  %v671 = vadd.f32 %v663, %v669
  %v672 = vadd.f32 %v664, %v669
  %v673 = vadd.f32 %v665, %v669
  %v674 = vmax.f32 %v670, 0.0
  %v675 = vmax.f32 %v671, 0.0
  %v676 = vmax.f32 %v672, 0.0
  %v677 = vmax.f32 %v673, 0.0
  %v678 = vadd.f32 %v674, %v675
  %v679 = vrot.slane %v678, 4
  %v680 = vadd.f32 %v678, %v679
  %v681 = vrot.slane %v680, 2
  %v682 = vadd.f32 %v680, %v681
  %v683 = vrot.slane %v682, 1
  %v684 = vadd.f32 %v682, %v683
  %v685 = vadd.f32 %v676, %v677
  %v686 = vrot.slane %v685, 4
  %v687 = vadd.f32 %v685, %v686
  %v688 = vrot.slane %v687, 2
  %v689 = vadd.f32 %v687, %v688
  %v690 = vrot.slane %v689, 1
  %v691 = vadd.f32 %v689, %v690
  %v692 = vld [vmem:[%s3] sm:$0xff]
  %v693 = vld [vmem:[%s3 + $0x8] sm:$0xff]
  %v694 = vld [vmem:[%s3 + $0x10] sm:$0xff]
  %v695 = vld [vmem:[%s3 + $0x18] sm:$0xff]
  %v696 = vld [vmem:[%s3 + $0x20] sm:$0xff]
  %v697 = vld [vmem:[%s3 + $0x28] sm:$0xff]
  %v698 = vld [vmem:[%s3 + $0x30] sm:$0xff]
  %v699 = vld [vmem:[%s3 + $0x38] sm:$0xff]
  %v700 = vld [vmem:[%s3 + $0x40] sm:$0xff]
  %v701 = vld [vmem:[%s3 + $0x48] sm:$0xff]
  %v702 = vld [vmem:[%s3 + $0x50] sm:$0xff]
  %v703 = vld [vmem:[%s3 + $0x58] sm:$0xff]
  %v704 = vld [vmem:[%s3 + $0x60] sm:$0xff]
  %v705 = vld [vmem:[%s3 + $0x68] sm:$0xff]
  %v706 = vld [vmem:[%s3 + $0x70] sm:$0xff]
  %v707 = vld [vmem:[%s3 + $0x78] sm:$0xff]
  %v708 = vlaneseq
  %v709 = vshrl.u32 %v708, 7
  %v710 = vsub.s32 2, %v709
  %v711 = vrot.slane %v20, %v710
  %vm714 = vcmask 1041409
  %v715 = vsel %vm714, %v691, %v684
  %717 = vmatprep.subr.mxu0 0.0
  %718 = vmatpush1.msra.mxu0 %v692
  %719 = vmatprep.subr.mxu0 0.0
  %720 = vmatpush1.msra.mxu0 %v693
  %721 = vmatprep.subr.mxu0 0.0
  %722 = vmatpush1.msra.mxu0 %v694
  %723 = vmatprep.subr.mxu0 0.0
  %724 = vmatpush1.msra.mxu0 %v695
  %725 = vmatprep.subr.mxu0 0.0
  %726 = vmatpush1.msra.mxu0 %v696
  %727 = vmatprep.subr.mxu0 0.0
  %728 = vmatpush1.msra.mxu0 %v697
  %729 = vmatprep.subr.mxu0 0.0
  %730 = vmatpush1.msra.mxu0 %v698
  %731 = vmatprep.subr.mxu0 0.0
  %732 = vmatpush1.msra.mxu0 %v699
  %733 = vmatprep.subr.mxu0 0.0
  %734 = vmatpush1.msra.mxu0 %v700
  %735 = vmatprep.subr.mxu0 0.0
  %736 = vmatpush1.msra.mxu0 %v701
  %737 = vmatprep.subr.mxu0 0.0
  %738 = vmatpush1.msra.mxu0 %v702
  %739 = vmatprep.subr.mxu0 0.0
  %740 = vmatpush1.msra.mxu0 %v703
  %741 = vmatprep.subr.mxu0 0.0
  %742 = vmatpush1.msra.mxu0 %v704
  %743 = vmatprep.subr.mxu0 0.0
  %744 = vmatpush1.msra.mxu0 %v705
  %745 = vmatprep.subr.mxu0 0.0
  %746 = vmatpush1.msra.mxu0 %v706
  %747 = vmatprep.subr.mxu0 0.0
  %748 = vmatpush1.msra.mxu0 %v707
  %749 = vmatprep.subr.mxu0 0.0
  %750 = vmatpush1.msra.mxu0 0.0
  %751 = vmatprep.subr.mxu0 0.0
  %752 = vmatpush1.msra.mxu0 0.0
  %753 = vmatprep.subr.mxu0 0.0
  %754 = vmatpush1.msra.mxu0 0.0
  %755 = vmatprep.subr.mxu0 0.0
  %756 = vmatpush1.msra.mxu0 0.0
  %757 = vmatprep.subr.mxu0 0.0
  %758 = vmatpush1.msra.mxu0 0.0
  %759 = vmatprep.subr.mxu0 0.0
  %760 = vmatpush1.msra.mxu0 0.0
  %761 = vmatprep.subr.mxu0 0.0
  %762 = vmatpush1.msra.mxu0 0.0
  %763 = vmatprep.subr.mxu0 0.0
  %764 = vmatpush1.msra.mxu0 0.0
  %765 = vmatprep.subr.mxu0 0.0
  %766 = vmatpush1.msra.mxu0 0.0
  %767 = vmatprep.subr.mxu0 0.0
  %768 = vmatpush1.msra.mxu0 0.0
  %769 = vmatprep.subr.mxu0 0.0
  %770 = vmatpush1.msra.mxu0 0.0
  %771 = vmatprep.subr.mxu0 0.0
  %772 = vmatpush1.msra.mxu0 0.0
  %773 = vmatprep.subr.mxu0 0.0
  %774 = vmatpush1.msra.mxu0 0.0
  %775 = vmatprep.subr.mxu0 0.0
  %776 = vmatpush1.msra.mxu0 0.0
  %777 = vmatprep.subr.mxu0 0.0
  %778 = vmatpush1.msra.mxu0 0.0
  %779 = vmatprep.subr.mxu0 0.0
  %780 = vmatpush1.msra.mxu0 0.0
  %781 = vmatprep.mubr.f32.mxu0 0.0
  %782 = vmatmul.mubr.f32.gmra.mrb[0].mxu0 %v715
  %v783 = vpop.f32.mrb[0].mxu0
  %v784 = vadd.f32 %v711, %v783
  %v785 = vpop.f32.mrb[0].mxu0
  %786 = vdwg.mxu0
  %v787 = vmax.f32 %v784, 0.0
  %v788 = vlaneseq
  %v789 = vshrl.u32 %v788, 7
  %v790 = vsub.s32 3, %v789
  %v791 = vrot.slane %v20, %v790
  %v792 = vmul.f32 %v787, %v791
  %vm793 = vcmask 517120
  %v794 = vsel %vm793, %v792, 0.0
  %795 = vadd.xlane.f32.xlu0 %v794
  %v796 = vpop.xlane.xlu0 %795
  %v797 = vlaneseq
  %v798 = vshrl.u32 %v797, 7
  %v799 = vsub.s32 4, %v798
  %v800 = vrot.slane %v20, %v799
  %v801 = vadd.f32 %v796, %v800
  %vm802 = vcmask 1024
  %803 = vst.msk [vmem:[%s5] sm:$0x3] %vm802, %v801
  // Predicated region
  $region22: #{tpu_custom_call.1} parent=0 // pred_check
    _
  $region23: #{tpu_custom_call.1} parent=0 // pred_check_branch
    %805 = sbr.rel (0) target = $region25
  $region24: #{tpu_custom_call.1} parent=0 // pred_region
    _
  $region25: #{tpu_custom_call.1} parent=0 // pred_fallthru
    _
  // Predicated region
  $region26: #{tpu_custom_call.1} parent=0 // pred_check
    _
  $region27: #{tpu_custom_call.1} parent=0 // pred_check_branch
    %807 = sbr.rel (0) target = $region29
  $region28: #{tpu_custom_call.1} parent=0 // pred_region
    _
  $region29: #{tpu_custom_call.1} parent=0 // pred_fallthru
    _

</llo_original>
